<compile_context>
chip_gen: v6e
topology: v6e:2x2x1
jax: 0.10.0
libtpu: 0.0.40
codegen_flags: <defaults>
</compile_context>

<pallas_src>
import jax
import jax.numpy as jnp
from jax.experimental import pallas as pl
from jax.experimental.pallas import tpu as pltpu

INPUT_DIM = 10
OUT_DIM = 1
DEFAULT_TILE_B = 8192  # v7x-safe (≈16 MiB double-buffered); sweepable upward on v5e/v6e


def _round_up(n, m):
    return ((n + m - 1) // m) * m


def linear_kernel(b_ref, wt_ref, x_ref, o_ref):
    # b_ref : (O,)          SMEM bias (O == 1, so b_ref[0] broadcast is exact)
    # wt_ref: (D, O)        VMEM, full extent (10, 1), resident across grid
    # x_ref : (TILE_B, D)   VMEM, native-layout batch tile of x
    # o_ref : (TILE_B, O)   VMEM, batch tile of y
    y = jnp.dot(x_ref[...], wt_ref[...], preferred_element_type=jnp.float32)
    # TODO(synk): b_ref[0] is only correct for OUT_DIM == 1; broadcast the full
    # (O,) bias per output channel if this is ever generalized.
    o_ref[...] = (y + b_ref[0]).astype(o_ref.dtype)


def linear_regression_forward(x, w, b, *, tile_b=DEFAULT_TILE_B):
    """x: (B, D) f32, w: (O, D) f32, b: (O,) f32 -> (B, O) f32."""
    B, D = x.shape
    O = w.shape[0]

    w_t = w.T  # (D, O) — 40 bytes, one-time layout plumbing.

    # Batch tile: sublane-aligned (multiple of 8), capped so the grid keeps
    # >=4 steps when possible (v7x megacore), and no larger than needed.
    tb = min(tile_b, _round_up(pl.cdiv(B, 4), 8))
    tb = max(tb, 8)
    grid = (pl.cdiv(B, tb),)

    y = pl.pallas_call(
        linear_kernel,
        out_shape=jax.ShapeDtypeStruct((B, O), jnp.float32),
        grid=grid,
        in_specs=[
            pl.BlockSpec(memory_space=pltpu.MemorySpace.SMEM),   # bias scalar
            pl.BlockSpec((D, O), lambda i: (0, 0)),              # W^T, resident
            pl.BlockSpec((tb, D), lambda i: (i, 0)),             # x batch tile
        ],
        out_specs=pl.BlockSpec((tb, O), lambda i: (i, 0)),       # y batch tile
        compiler_params=pltpu.CompilerParams(
            dimension_semantics=("parallel",)),
        cost_estimate=pl.CostEstimate(
            flops=2 * B * D * O,
            bytes_accessed=(B * D + D * O + O + B * O) * 4,
            transcendentals=0),
    )(b, w_t, x)

    return y


if __name__ == "__main__":
    key = jax.random.PRNGKey(0)
    kx, kw, kb, kx2 = jax.random.split(key, 4)

    # Deterministic parameter init (mimics nn.Linear's uniform(-1/sqrt(D), 1/sqrt(D)))
    bound = 1.0 / jnp.sqrt(jnp.float32(INPUT_DIM))
    w = jax.random.uniform(kw, (OUT_DIM, INPUT_DIM), dtype=jnp.float32,
                           minval=-bound, maxval=bound)
    b = jax.random.uniform(kb, (OUT_DIM,), dtype=jnp.float32,
                           minval=-bound, maxval=bound)

    # Small batch (single grid step).
    batch = 8
    x = jax.random.normal(kx, (batch, INPUT_DIM), dtype=jnp.float32)
    y = linear_regression_forward(x, w, b)
    jax.block_until_ready(y)
    y_ref = x @ w.T + b
    assert y.shape == (batch, OUT_DIM)
    assert jnp.allclose(y, y_ref, atol=1e-5, rtol=1e-5)

    # Larger batch exercising multiple grid steps + ragged last block.
    batch2 = 1100
    x2 = jax.random.normal(kx2, (batch2, INPUT_DIM), dtype=jnp.float32)
    y2 = linear_regression_forward(x2, w, b)
    jax.block_until_ready(y2)
    y2_ref = x2 @ w.T + b
    assert y2.shape == (batch2, OUT_DIM)
    assert jnp.allclose(y2, y2_ref, atol=1e-5, rtol=1e-5)

    print("KERNEL_OK")
</pallas_src>

<mosaic_0001>
module attributes {stable_mosaic.version = 11 : i64} {
  func.func @linear_kernel(%arg0: i32, %arg1: memref<1xf32, #tpu.memory_space<smem>>, %arg2: memref<10x1xf32, #tpu.memory_space<vmem>>, %arg3: memref<8x10xf32, #tpu.memory_space<vmem>>, %arg4: memref<8x1xf32, #tpu.memory_space<vmem>>) attributes {dimension_semantics = [#tpu.dimension_semantics<parallel>], iteration_bounds = array<i64: 1>, scalar_prefetch = 0 : i64, scratch_operands = 0 : i64, tpu.core_type = #tpu.core_type<tc>, window_params = [{transform_indices = @transform_0, window_bounds = array<i64: 1>}, {pipeline_mode = #tpu.pipeline_mode<synchronous>, transform_indices = @transform_1, window_bounds = array<i64: 10, 1>}, {transform_indices = @transform_2, window_bounds = array<i64: 8, 10>}, {transform_indices = @transform_3, window_bounds = array<i64: 8, 1>}]} {
    %c0 = arith.constant 0 : index
    %c0_0 = arith.constant 0 : index
    %0 = vector.load %arg3[%c0, %c0_0] : memref<8x10xf32, #tpu.memory_space<vmem>>, vector<8x10xf32>
    %c0_1 = arith.constant 0 : index
    %c0_2 = arith.constant 0 : index
    %1 = vector.load %arg2[%c0_1, %c0_2] : memref<10x1xf32, #tpu.memory_space<vmem>>, vector<10x1xf32>
    %cst = arith.constant dense<0.000000e+00> : vector<8x1xf32>
    %2 = tpu.matmul %0, %1, %cst {dimension_numbers = #tpu.dot_dimension_numbers<[1], [0], [0], [1], [0, 0, 1, 1], [], []>} : vector<8x10xf32>, vector<10x1xf32>, vector<8x1xf32> -> vector<8x1xf32>
    %c0_3 = arith.constant 0 : index
    %3 = memref.load %arg1[%c0_3] : memref<1xf32, #tpu.memory_space<smem>>
    %4 = vector.broadcast %3 : f32 to vector<8x1xf32>
    %5 = arith.addf %2, %4 : vector<8x1xf32>
    %c0_4 = arith.constant 0 : index
    %c0_5 = arith.constant 0 : index
    %6 = vector.load %arg4[%c0_4, %c0_5] : memref<8x1xf32, #tpu.memory_space<vmem>>, vector<8x1xf32>
    tpu.vector_store %arg4[%c0_4, %c0_5], %5 {strides = array<i32>} : memref<8x1xf32, #tpu.memory_space<vmem>>, vector<8x1xf32>,
    return
  }
  func.func @transform_0(%arg0: i32) -> i32 {
    %c0_i32 = arith.constant 0 : i32
    %c0_i32_0 = arith.constant 0 : i32
    return %c0_i32 : i32
  }
  func.func @transform_1(%arg0: i32) -> (i32, i32) {
    %c0_i32 = arith.constant 0 : i32
    %c0_i32_0 = arith.constant 0 : i32
    %c0_i32_1 = arith.constant 0 : i32
    return %c0_i32, %c0_i32_0 : i32, i32
  }
  func.func @transform_2(%arg0: i32) -> (i32, i32) {
    %c0_i32 = arith.constant 0 : i32
    %c0_i32_0 = arith.constant 0 : i32
    return %arg0, %c0_i32 : i32, i32
  }
  func.func @transform_3(%arg0: i32) -> (i32, i32) {
    %c0_i32 = arith.constant 0 : i32
    %c0_i32_0 = arith.constant 0 : i32
    return %arg0, %c0_i32 : i32, i32
  }
}

</mosaic_0001>

<llo_original>
// kernel: tpu_custom_call.1
$region0: #{tpu_custom_call.1}
  #allocation0 [shape = 'u32[]', space=smem, size = 0x4, offset = 0x4, fixed_abs, tag = 'smem constant byte address 0x4 - core index']
  #allocation1 [shape = 'u32[144,128]{1,0:T(1,128)}', space=vmem, size = 0x12000, scoped, tag = 'internal scratch']
  #allocation2 [shape = 'f32[1]{0:T(128)S(6)}', space=smem, size = 0x200, scoped, tag = 'scoped memory for tpu_custom_call.1']
  %s0 = inlined_call_operand.<no memory space> [shape: f32[1], index: 0, kind: input, shape index: {}]
  %s1 = inlined_call_operand.vmem [shape: f32[10,1], index: 1, kind: input, shape index: {}]
  %s2 = inlined_call_operand.vmem [shape: f32[8,10], index: 2, kind: input, shape index: {}]
  %s3 = inlined_call_operand.vmem [shape: f32[8,1], index: 3, kind: output, shape index: {}]
  %s4 = sld [smem:[#allocation0]]
  $region22: #{tpu_custom_call.1} parent=0
    _
  %s6 = ssub.s32 1, %s4
  %s7 = scalar_select 0, %s6, %s4
  %8 = sst [smem:[#allocation2]] %s0
  // Predicated region
  $region2: #{tpu_custom_call.1} parent=0 // pred_check
    _
  $region3: #{tpu_custom_call.1} parent=0 // pred_check_branch
    %10 = sbr.rel (0) target = $region5
  $region4: #{tpu_custom_call.1} parent=0 // pred_region
    _
  $region5: #{tpu_custom_call.1} parent=0 // pred_fallthru
    _
  // Predicated region
  $region6: #{tpu_custom_call.1} parent=0 // pred_check
    _
  $region7: #{tpu_custom_call.1} parent=0 // pred_check_branch
    %12 = sbr.rel (0) target = $region9
  $region8: #{tpu_custom_call.1} parent=0 // pred_region
    _
  $region9: #{tpu_custom_call.1} parent=0 // pred_fallthru
    _
  // Predicated region
  $region10: #{tpu_custom_call.1} parent=0 // pred_check
    _
  $region11: #{tpu_custom_call.1} parent=0 // pred_check_branch
    %14 = sbr.rel (0) target = $region13
  $region12: #{tpu_custom_call.1} parent=0 // pred_region
    _
  $region13: #{tpu_custom_call.1} parent=0 // pred_fallthru
    _
  %v15 = vld [vmem:[%s2] sm:$0xff]
  %v16 = vld [vmem:[%s1] sm:$0xff]
  %v17 = vld [vmem:[%s1 + $0x8] sm:$0x3]
  %s18 = sld [smem:[#allocation2]]
  %v19 = vstv %s18
  %vm20 = vcmask 80896
  %v22 = vsel %vm20, %v15, 0
  %vm24 = vcmask 1041408
  %v26 = vsel %vm24, %v17, 0
  %28 = vmatprep.subr.mxu0 0.0
  %29 = vmatpush1.msra.mxu0 0.0
  %30 = vmatprep.subr.mxu0 0.0
  %31 = vmatpush1.msra.mxu0 0.0
  %32 = vmatprep.subr.mxu0 0.0
  %33 = vmatpush1.msra.mxu0 0.0
  %34 = vmatprep.subr.mxu0 0.0
  %35 = vmatpush1.msra.mxu0 0.0
  %36 = vmatprep.subr.mxu0 0.0
  %37 = vmatpush1.msra.mxu0 0.0
  %38 = vmatprep.subr.mxu0 0.0
  %39 = vmatpush1.msra.mxu0 0.0
  %40 = vmatprep.subr.mxu0 0.0
  %41 = vmatpush1.msra.mxu0 0.0
  %42 = vmatprep.subr.mxu0 0.0
  %43 = vmatpush1.msra.mxu0 0.0
  %44 = vmatprep.subr.mxu0 0.0
  %45 = vmatpush1.msra.mxu0 0.0
  %46 = vmatprep.subr.mxu0 0.0
  %47 = vmatpush1.msra.mxu0 0.0
  %48 = vmatprep.subr.mxu0 0.0
  %49 = vmatpush1.msra.mxu0 0.0
  %50 = vmatprep.subr.mxu0 0.0
  %51 = vmatpush1.msra.mxu0 0.0
  %52 = vmatprep.subr.mxu0 0.0
  %53 = vmatpush1.msra.mxu0 0.0
  %54 = vmatprep.subr.mxu0 0.0
  %55 = vmatpush1.msra.mxu0 0.0
  %56 = vmatprep.subr.mxu0 0.0
  %57 = vmatpush1.msra.mxu0 %v26
  %58 = vmatprep.subr.mxu0 0.0
  %59 = vmatpush1.msra.mxu0 %v16
  %60 = vmatprep.subr.mxu0 0.0
  %61 = vmatpush2.msra.mxu0 0.0
  %62 = vmatprep.subr.mxu0 0.0
  %63 = vmatpush2.msra.mxu0 0.0
  %64 = vmatprep.subr.mxu0 0.0
  %65 = vmatpush2.msra.mxu0 0.0
  %66 = vmatprep.subr.mxu0 0.0
  %67 = vmatpush2.msra.mxu0 0.0
  %68 = vmatprep.subr.mxu0 0.0
  %69 = vmatpush2.msra.mxu0 0.0
  %70 = vmatprep.subr.mxu0 0.0
  %71 = vmatpush2.msra.mxu0 0.0
  %72 = vmatprep.subr.mxu0 0.0
  %73 = vmatpush2.msra.mxu0 0.0
  %74 = vmatprep.subr.mxu0 0.0
  %75 = vmatpush2.msra.mxu0 0.0
  %76 = vmatprep.subr.mxu0 0.0
  %77 = vmatpush2.msra.mxu0 0.0
  %78 = vmatprep.subr.mxu0 0.0
  %79 = vmatpush2.msra.mxu0 0.0
  %80 = vmatprep.subr.mxu0 0.0
  %81 = vmatpush2.msra.mxu0 0.0
  %82 = vmatprep.subr.mxu0 0.0
  %83 = vmatpush2.msra.mxu0 0.0
  %84 = vmatprep.subr.mxu0 0.0
  %85 = vmatpush2.msra.mxu0 0.0
  %86 = vmatprep.subr.mxu0 0.0
  %87 = vmatpush2.msra.mxu0 0.0
  %88 = vmatprep.subr.mxu0 0.0
  %89 = vmatpush2.msra.mxu0 0.0
  %90 = vmatprep.subr.mxu0 0.0
  %91 = vmatpush2.msra.mxu0 0.0
  %92 = vmatprep.mubr.f32.mxu0 0.0
  %93 = vmatmul.mubr.f32.gmra.mxu0 %v22
  %v94 = vpop.f32.mrf.mxu0
  %v95 = vadd.f32 %v19, %v94
  %v96 = vpop.f32.mrf.mxu0
  %97 = vdwg.mxu0
  %vm98 = vcmask 7168
  %99 = vst.msk [vmem:[%s3] sm:$0xff] %vm98, %v95
  // Predicated region
  $region14: #{tpu_custom_call.1} parent=0 // pred_check
    _
  $region15: #{tpu_custom_call.1} parent=0 // pred_check_branch
    %101 = sbr.rel (0) target = $region17
  $region16: #{tpu_custom_call.1} parent=0 // pred_region
    _
  $region17: #{tpu_custom_call.1} parent=0 // pred_fallthru
    _
  // Predicated region
  $region18: #{tpu_custom_call.1} parent=0 // pred_check
    _
  $region19: #{tpu_custom_call.1} parent=0 // pred_check_branch
    %103 = sbr.rel (0) target = $region21
  $region20: #{tpu_custom_call.1} parent=0 // pred_region
    _
  $region21: #{tpu_custom_call.1} parent=0 // pred_fallthru
    _

</llo_original>
